<compile_context>
chip_gen: v5e
topology: v5e:2x2
jax: 0.10.0
libtpu: 0.0.40
codegen_flags: <defaults>
</compile_context>

<pallas_src>
import functools
import math

import jax
import jax.numpy as jnp
from jax import lax
from jax.experimental import pallas as pl
from jax.experimental.pallas import tpu as pltpu

PI = math.pi


# ---------------------------------------------------------------------------
# Fused kernel: MLP fwd + analytic dy/dx + residuals + scalar loss
# ---------------------------------------------------------------------------
def _fused_pinn_loss_kernel(n_x, n_init, gamma_ref, x_ref, pp_ref, w2_ref,
                            out_ref, stk_ref):
    """Lane-dense layout: points on the lane axis, hidden units on sublanes.

    gamma_ref : SMEM [1]      inverse-problem parameter gamma
    x_ref     : VMEM [1, NP]  first n_x collocation points, then n_init
                              initial points, then zero padding (NP % 128 == 0)
    pp_ref    : VMEM [H, 8]   packed small params:
                              col0 = w1^T, col1 = b1, col2 = b2, col3 = w3,
                              col4 row0 = b3
    w2_ref    : VMEM [H, H]   second-layer weight (transposed, i.e. w2.T)
    out_ref   : SMEM [1, 1]   total loss
    stk_ref   : VMEM [H, 2*NP] scratch for the stacked (fwd | derivative) streams
    """
    x = x_ref[...]                                        # [1, NP]
    npad = x.shape[1]

    pp = pp_ref[...]                                      # [H, 8]
    w1c = pp[:, 0:1]                                      # [H, 1]
    b1c = pp[:, 1:2]                                      # [H, 1]
    b2c = pp[:, 2:3]                                      # [H, 1]
    w3c = pp[:, 3:4]                                      # [H, 1]
    b3v = pp[0:1, 4:5]                                    # [1, 1]

    # ---- layer 1 (K=1 matmul as broadcast multiply) + x-derivative ---------
    a1 = jnp.tanh(w1c * x + b1c)                          # [H, NP]
    da1 = (1.0 - a1 * a1) * w1c                           # [H, NP]

    # ---- layer 2: one stacked MXU matmul; stacked buffer built in-place ----
    stk_ref[:, :npad] = a1
    stk_ref[:, npad:] = da1
    z = jnp.dot(w2_ref[...], stk_ref[...],
                preferred_element_type=jnp.float32)       # [H, 2*NP]
    a2 = jnp.tanh(z[:, :npad] + b2c)                      # [H, NP]
    da2 = (1.0 - a2 * a2) * z[:, npad:]                   # [H, NP]

    # ---- output layer: broadcast multiply + sublane reduce (no MXU) --------
    y = jnp.sum(a2 * w3c, axis=0, keepdims=True) + b3v    # [1, NP]
    dy = jnp.sum(da2 * w3c, axis=0, keepdims=True)        # [1, NP]

    # ---- residuals: shared transcendentals, single fused masked reduction --
    gamma = gamma_ref[0]
    t = (0.5 * PI) * x
    exact = 2.5 * (x + jnp.sin(t))                        # exact solution
    r_eq = dy - gamma * (1.0 + (0.5 * PI) * jnp.cos(t))   # PDE residual
    r_fit = y - exact                                     # shared by init + sol

    idx = lax.broadcasted_iota(jnp.int32, (1, npad), 1)
    eq_sq = jnp.where(idx < n_x, r_eq * r_eq, 0.0)                 # loss_of_eq
    fit_sq = jnp.where(idx < n_x + n_init, r_fit * r_fit, 0.0)     # init + sol
    out_ref[0, 0] = jnp.sum(eq_sq + fit_sq)


# ---------------------------------------------------------------------------
# Wrapper: pack params once, one fused pallas_call per loss evaluation
# ---------------------------------------------------------------------------
def pack_params(params):
    """One-time re-layout of the MLP weights (hoisted out of the step)."""
    w1, b1, w2, b2, w3, b3 = params
    h = w1.shape[1]
    b3_col = jnp.zeros((h, 1), jnp.float32).at[0, 0].set(b3[0, 0])
    packed = jnp.concatenate(
        [w1.reshape(h, 1), b1.reshape(h, 1), b2.reshape(h, 1),
         w3.reshape(h, 1), b3_col, jnp.zeros((h, 3), jnp.float32)],
        axis=1).astype(jnp.float32)                       # [H, 8]
    w2t = jnp.transpose(w2).astype(jnp.float32)           # [H, H]
    return packed, w2t


@jax.jit
def pinn_loss(packed_params, w2t, x, initial_point, gamma):
    """x: [N], initial_point: [M], gamma: scalar -> [1,1] total loss."""
    h = w2t.shape[0]
    n = x.shape[0]
    m = initial_point.shape[0]
    n_pad = max(128, ((n + m + 127) // 128) * 128)

    # Batch collocation + initial points into one lane-dense row, zero padded.
    pad = jnp.zeros((n_pad - n - m,), jnp.float32)
    xs = jnp.concatenate(
        [x.astype(jnp.float32), initial_point.astype(jnp.float32), pad]
    ).reshape(1, n_pad)
    gamma_arr = jnp.asarray(gamma, jnp.float32).reshape(1)

    vmem = pl.BlockSpec(memory_space=pltpu.MemorySpace.VMEM)
    smem = pl.BlockSpec(memory_space=pltpu.MemorySpace.SMEM)
    kernel = functools.partial(_fused_pinn_loss_kernel, n, m)
    return pl.pallas_call(
        kernel,
        out_shape=jax.ShapeDtypeStruct((1, 1), jnp.float32),
        in_specs=[smem, vmem, vmem, vmem],
        out_specs=smem,
        scratch_shapes=[pltpu.VMEM((h, 2 * n_pad), jnp.float32)],
    )(gamma_arr, xs, packed_params, w2t)


# ---------------------------------------------------------------------------
# Deterministic parameter init + pure-JAX reference for sanity checking
# ---------------------------------------------------------------------------
def init_params(key, hidden):
    k1, k2, k3 = jax.random.split(key, 3)
    w1 = jax.random.normal(k1, (1, hidden), jnp.float32) * 0.5
    b1 = jnp.zeros((1, hidden), jnp.float32)
    w2 = jax.random.normal(k2, (hidden, hidden), jnp.float32) * (1.0 / math.sqrt(hidden))
    b2 = jnp.zeros((1, hidden), jnp.float32)
    w3 = jax.random.normal(k3, (hidden, 1), jnp.float32) * (1.0 / math.sqrt(hidden))
    b3 = jnp.zeros((1, 1), jnp.float32)
    return (w1, b1, w2, b2, w3, b3)


def _mlp_ref(params, x_col):
    w1, b1, w2, b2, w3, b3 = params
    a1 = jnp.tanh(x_col @ w1 + b1)
    a2 = jnp.tanh(a1 @ w2 + b2)
    return a2 @ w3 + b3


def _loss_ref(params, x, initial_point, gamma):
    x_col = x.reshape(-1, 1)
    ip_col = initial_point.reshape(-1, 1)
    y_pred = _mlp_ref(params, x_col)
    dy_dx = jax.vmap(jax.grad(lambda s: _mlp_ref(params, s.reshape(1, 1))[0, 0]))(x)
    exact = lambda t: 2.5 * (t + jnp.sin(PI * t / 2.0))
    r_eq = dy_dx - gamma * (1.0 + PI * jnp.cos(PI * x / 2.0) / 2.0)
    l_eq = r_eq @ r_eq
    r_init = _mlp_ref(params, ip_col) - exact(ip_col)
    r_sol = y_pred - exact(x_col)
    return l_eq + (r_init.T @ r_init) + (r_sol.T @ r_sol)


if __name__ == "__main__":
    key = jax.random.PRNGKey(0)
    kp, kx, ki = jax.random.split(key, 3)

    N, M, H = 64, 8, 32
    params = init_params(kp, H)
    x = jax.random.uniform(kx, (N,), jnp.float32, minval=0.0, maxval=1.0)
    initial_point = jax.random.uniform(ki, (M,), jnp.float32, minval=0.0, maxval=0.1)
    gamma = 1.7

    packed_params, w2t = pack_params(params)   # one-time re-layout
    out = jax.block_until_ready(pinn_loss(packed_params, w2t, x, initial_point, gamma))
    ref = _loss_ref(params, x, initial_point, gamma)

    assert out.shape == (1, 1)
    assert jnp.allclose(out, ref, rtol=1e-4, atol=1e-4), (out, ref)
    print("KERNEL_OK")
</pallas_src>

<mosaic_0001>
module attributes {stable_mosaic.version = 11 : i64} {
  func.func @_fused_pinn_loss_kernel(%arg0: memref<1xf32, #tpu.memory_space<smem>>, %arg1: memref<1x128xf32, #tpu.memory_space<vmem>>, %arg2: memref<32x8xf32, #tpu.memory_space<vmem>>, %arg3: memref<32x32xf32, #tpu.memory_space<vmem>>, %arg4: memref<1x1xf32, #tpu.memory_space<smem>>, %arg5: memref<32x256xf32, #tpu.memory_space<vmem>>) attributes {dimension_semantics = [], scalar_prefetch = 0 : i64, scratch_operands = 1 : i64, tpu.core_type = #tpu.core_type<tc>} {
    %c0 = arith.constant 0 : index
    %c0_0 = arith.constant 0 : index
    %0 = vector.load %arg1[%c0, %c0_0] : memref<1x128xf32, #tpu.memory_space<vmem>>, vector<1x128xf32>
    %c0_1 = arith.constant 0 : index
    %c0_2 = arith.constant 0 : index
    %1 = vector.load %arg2[%c0_1, %c0_2] : memref<32x8xf32, #tpu.memory_space<vmem>>, vector<32x8xf32>
    %2 = vector.extract_strided_slice %1 {offsets = [0, 0], sizes = [32, 1], strides = [1, 1]} : vector<32x8xf32> to vector<32x1xf32>
    %3 = vector.extract_strided_slice %1 {offsets = [0, 1], sizes = [32, 1], strides = [1, 1]} : vector<32x8xf32> to vector<32x1xf32>
    %4 = vector.extract_strided_slice %1 {offsets = [0, 2], sizes = [32, 1], strides = [1, 1]} : vector<32x8xf32> to vector<32x1xf32>
    %5 = vector.extract_strided_slice %1 {offsets = [0, 3], sizes = [32, 1], strides = [1, 1]} : vector<32x8xf32> to vector<32x1xf32>
    %6 = vector.extract_strided_slice %1 {offsets = [0, 4], sizes = [1, 1], strides = [1, 1]} : vector<32x8xf32> to vector<1x1xf32>
    %7 = vector.broadcast %2 : vector<32x1xf32> to vector<32x128xf32>
    %8 = vector.broadcast %0 : vector<1x128xf32> to vector<32x128xf32>
    %9 = arith.mulf %7, %8 : vector<32x128xf32>
    %10 = vector.broadcast %3 : vector<32x1xf32> to vector<32x128xf32>
    %11 = arith.addf %9, %10 : vector<32x128xf32>
    %12 = math.tanh %11 : vector<32x128xf32>
    %13 = arith.mulf %12, %12 : vector<32x128xf32>
    %cst = arith.constant 1.000000e+00 : f32
    %14 = vector.broadcast %cst : f32 to vector<32x128xf32>
    %15 = arith.subf %14, %13 : vector<32x128xf32>
    %16 = vector.broadcast %2 : vector<32x1xf32> to vector<32x128xf32>
    %17 = arith.mulf %15, %16 : vector<32x128xf32>
    %c0_3 = arith.constant 0 : index
    %c0_4 = arith.constant 0 : index
    %18 = vector.load %arg5[%c0_3, %c0_4] : memref<32x256xf32, #tpu.memory_space<vmem>>, vector<32x128xf32>
    tpu.vector_store %arg5[%c0_3, %c0_4], %12 {strides = array<i32>} : memref<32x256xf32, #tpu.memory_space<vmem>>, vector<32x128xf32>,
    %c0_5 = arith.constant 0 : index
    %c128 = arith.constant 128 : index
    %19 = vector.load %arg5[%c0_5, %c128] : memref<32x256xf32, #tpu.memory_space<vmem>>, vector<32x128xf32>
    tpu.vector_store %arg5[%c0_5, %c128], %17 {strides = array<i32>} : memref<32x256xf32, #tpu.memory_space<vmem>>, vector<32x128xf32>,
    %c0_6 = arith.constant 0 : index
    %c0_7 = arith.constant 0 : index
    %20 = vector.load %arg3[%c0_6, %c0_7] : memref<32x32xf32, #tpu.memory_space<vmem>>, vector<32x32xf32>
    %c0_8 = arith.constant 0 : index
    %c0_9 = arith.constant 0 : index
    %21 = vector.load %arg5[%c0_8, %c0_9] : memref<32x256xf32, #tpu.memory_space<vmem>>, vector<32x256xf32>
    %cst_10 = arith.constant dense<0.000000e+00> : vector<32x256xf32>
    %22 = tpu.matmul %20, %21, %cst_10 {dimension_numbers = #tpu.dot_dimension_numbers<[1], [0], [0], [1], [0, 0, 1, 1], [], []>} : vector<32x32xf32>, vector<32x256xf32>, vector<32x256xf32> -> vector<32x256xf32>
    %23 = vector.extract_strided_slice %22 {offsets = [0, 0], sizes = [32, 128], strides = [1, 1]} : vector<32x256xf32> to vector<32x128xf32>
    %24 = vector.broadcast %4 : vector<32x1xf32> to vector<32x128xf32>
    %25 = arith.addf %23, %24 : vector<32x128xf32>
    %26 = math.tanh %25 : vector<32x128xf32>
    %27 = arith.mulf %26, %26 : vector<32x128xf32>
    %cst_11 = arith.constant 1.000000e+00 : f32
    %28 = vector.broadcast %cst_11 : f32 to vector<32x128xf32>
    %29 = arith.subf %28, %27 : vector<32x128xf32>
    %30 = vector.extract_strided_slice %22 {offsets = [0, 128], sizes = [32, 128], strides = [1, 1]} : vector<32x256xf32> to vector<32x128xf32>
    %31 = arith.mulf %29, %30 : vector<32x128xf32>
    %32 = vector.broadcast %5 : vector<32x1xf32> to vector<32x128xf32>
    %33 = arith.mulf %26, %32 : vector<32x128xf32>
    %cst_12 = arith.constant dense<0.000000e+00> : vector<128xf32>
    %34 = vector.multi_reduction <add>, %33, %cst_12 [0] : vector<32x128xf32> to vector<128xf32>
    %35 = vector.shape_cast %34 : vector<128xf32> to vector<1x128xf32>
    %36 = vector.broadcast %6 : vector<1x1xf32> to vector<1x128xf32>
    %37 = arith.addf %35, %36 : vector<1x128xf32>
    %38 = vector.broadcast %5 : vector<32x1xf32> to vector<32x128xf32>
    %39 = arith.mulf %31, %38 : vector<32x128xf32>
    %cst_13 = arith.constant dense<0.000000e+00> : vector<128xf32>
    %40 = vector.multi_reduction <add>, %39, %cst_13 [0] : vector<32x128xf32> to vector<128xf32>
    %41 = vector.shape_cast %40 : vector<128xf32> to vector<1x128xf32>
    %c0_14 = arith.constant 0 : index
    %42 = memref.load %arg0[%c0_14] : memref<1xf32, #tpu.memory_space<smem>>
    %cst_15 = arith.constant 1.57079637 : f32
    %43 = vector.broadcast %cst_15 : f32 to vector<1x128xf32>
    %44 = arith.mulf %43, %0 : vector<1x128xf32>
    %45 = math.sin %44 : vector<1x128xf32>
    %46 = arith.addf %0, %45 : vector<1x128xf32>
    %cst_16 = arith.constant 2.500000e+00 : f32
    %47 = vector.broadcast %cst_16 : f32 to vector<1x128xf32>
    %48 = arith.mulf %47, %46 : vector<1x128xf32>
    %49 = math.cos %44 : vector<1x128xf32>
    %cst_17 = arith.constant 1.57079637 : f32
    %50 = vector.broadcast %cst_17 : f32 to vector<1x128xf32>
    %51 = arith.mulf %50, %49 : vector<1x128xf32>
    %cst_18 = arith.constant 1.000000e+00 : f32
    %52 = vector.broadcast %cst_18 : f32 to vector<1x128xf32>
    %53 = arith.addf %52, %51 : vector<1x128xf32>
    %54 = vector.broadcast %42 : f32 to vector<1x128xf32>
    %55 = arith.mulf %54, %53 : vector<1x128xf32>
    %56 = arith.subf %41, %55 : vector<1x128xf32>
    %57 = arith.subf %37, %48 : vector<1x128xf32>
    %58 = tpu.iota {dimensions = array<i32: 1>} : vector<1x128xi32>
    %c64_i32 = arith.constant 64 : i32
    %59 = vector.broadcast %c64_i32 : i32 to vector<1x128xi32>
    %60 = arith.cmpi slt, %58, %59 : vector<1x128xi32>
    %61 = arith.mulf %56, %56 : vector<1x128xf32>
    %cst_19 = arith.constant 0.000000e+00 : f32
    %62 = vector.broadcast %cst_19 : f32 to vector<1x128xf32>
    %63 = arith.select %60, %61, %62 : vector<1x128xi1>, vector<1x128xf32>
    %c72_i32 = arith.constant 72 : i32
    %64 = vector.broadcast %c72_i32 : i32 to vector<1x128xi32>
    %65 = arith.cmpi slt, %58, %64 : vector<1x128xi32>
    %66 = arith.mulf %57, %57 : vector<1x128xf32>
    %cst_20 = arith.constant 0.000000e+00 : f32
    %67 = vector.broadcast %cst_20 : f32 to vector<1x128xf32>
    %68 = arith.select %65, %66, %67 : vector<1x128xi1>, vector<1x128xf32>
    %69 = arith.addf %63, %68 : vector<1x128xf32>
    %70 = vector.shape_cast %69 : vector<1x128xf32> to vector<1x1x128xf32>
    %cst_21 = arith.constant dense<0.000000e+00> : vector<1xf32>
    %71 = vector.multi_reduction <add>, %70, %cst_21 [1, 2] : vector<1x1x128xf32> to vector<1xf32>
    %72 = vector.shape_cast %71 : vector<1xf32> to vector<1x1x1xf32>
    %73 = vector.extract %72[0, 0, 0] : f32 from vector<1x1x1xf32>
    %c0_22 = arith.constant 0 : index
    %c0_23 = arith.constant 0 : index
    %74 = memref.load %arg4[%c0_22, %c0_23] : memref<1x1xf32, #tpu.memory_space<smem>>
    memref.store %73, %arg4[%c0_22, %c0_23] : memref<1x1xf32, #tpu.memory_space<smem>>
    return
  }
}

</mosaic_0001>

<llo_original>
// kernel: pinn_loss.1
$region0: #{pinn_loss.1}
  #allocation0 [shape = 'u32[]', space=smem, size = 0x4, offset = 0x4, fixed_abs, tag = 'smem constant byte address 0x4 - core index']
  #allocation1 [shape = 'u32[72,128]{1,0:T(1,128)}', space=vmem, size = 0x9000, scoped, tag = 'internal scratch']
  #allocation2 [shape = 'f32[32,256]{1,0:T(8,128)}', space=vmem, size = 0x8000, scoped, tag = 'scratch operand']
  #allocation3 [shape = 'f32[1]{0:T(128)S(6)}', space=smem, size = 0x200, scoped, tag = 'scoped memory for pinn_loss.1']
  %s0 = inlined_call_operand.<no memory space> [shape: f32[1], index: 0, kind: input, shape index: {}]
  %s1 = inlined_call_operand.vmem [shape: f32[1,128], index: 1, kind: input, shape index: {}]
  %s2 = inlined_call_operand.vmem [shape: f32[32,8], index: 2, kind: input, shape index: {}]
  %s3 = inlined_call_operand.vmem [shape: f32[32,32], index: 3, kind: input, shape index: {}]
  %s4 = inlined_call_operand.hbm [shape: f32[1,1], index: 4, kind: output, shape index: {}]
  %s5 = sld [smem:[#allocation0]]
  $region26: #{pinn_loss.1} parent=0
    _
  %s7 = ssub.s32 1, %s5
  %s8 = scalar_select 0, %s7, %s5
  %9 = sst [smem:[#allocation3]] %s0
  $region1: #{pinn_loss.1} parent=0
    #allocation4 [shape = 'u8[512]{0}', space=smem, size = 0x200, scoped, tag = 'output window, operand 0, single buffered']
    #allocation5 [shape = 's32[1]{0}', space=sflag, size = 0x4, scoped, tag = 'scoped memory for pinn_loss.1']
    %10 = vsyncpa [#allocation5], 0
    // Predicated region
    $region2: #{pinn_loss.1} parent=1 // pred_check
      _
    $region3: #{pinn_loss.1} parent=1 // pred_check_branch
      %12 = sbr.rel (0) target = $region5
    $region4: #{pinn_loss.1} parent=1 // pred_region
      _
    $region5: #{pinn_loss.1} parent=1 // pred_fallthru
      _
    // Predicated region
    $region6: #{pinn_loss.1} parent=1 // pred_check
      _
    $region7: #{pinn_loss.1} parent=1 // pred_check_branch
      %14 = sbr.rel (0) target = $region9
    $region8: #{pinn_loss.1} parent=1 // pred_region
      _
    $region9: #{pinn_loss.1} parent=1 // pred_fallthru
      _
    // Predicated region
    $region10: #{pinn_loss.1} parent=1 // pred_check
      _
    $region11: #{pinn_loss.1} parent=1 // pred_check_branch
      %16 = sbr.rel (0) target = $region13
    $region12: #{pinn_loss.1} parent=1 // pred_region
      _
    $region13: #{pinn_loss.1} parent=1 // pred_fallthru
      _
    // Predicated region
    $region14: #{pinn_loss.1} parent=1 // pred_check
      _
    $region15: #{pinn_loss.1} parent=1 // pred_check_branch
      %18 = sbr.rel (0) target = $region17
    $region16: #{pinn_loss.1} parent=1 // pred_region
      _
    $region17: #{pinn_loss.1} parent=1 // pred_fallthru
      _
    %v19 = vld [vmem:[%s1] sm:$0x1]
    %v20 = vld [vmem:[%s2] sm:$0xff]
    %v21 = vld [vmem:[%s2 + $0x8] sm:$0xff]
    %v22 = vld [vmem:[%s2 + $0x10] sm:$0xff]
    %v23 = vld [vmem:[%s2 + $0x18] sm:$0xff]
    %25 = vset.pattern.permute.xlu0 0
    %26 = vperm.xlu0 %25, %v20
    %v27 = vpop.permute.xlu0 %26
    %30 = vset.pattern.permute.xlu0 0
    %31 = vperm.xlu0 %30, %v21
    %v32 = vpop.permute.xlu0 %31
    %35 = vset.pattern.permute.xlu0 0
    %36 = vperm.xlu0 %35, %v22
    %v37 = vpop.permute.xlu0 %36
    %40 = vset.pattern.permute.xlu0 0
    %41 = vperm.xlu0 %40, %v23
    %v42 = vpop.permute.xlu0 %41
    %v45 = vperm.slane %v19, 0
    %v47 = vmul.f32 %v27, %v45
    %v48 = vmul.f32 %v32, %v45
    %v49 = vmul.f32 %v37, %v45
    %v50 = vmul.f32 %v42, %v45
    %51 = vset.pattern.permute.xlu0 1
    %52 = vperm.xlu0 %51, %v20
    %v53 = vpop.permute.xlu0 %52
    %55 = vset.pattern.permute.xlu0 1
    %56 = vperm.xlu0 %55, %v21
    %v57 = vpop.permute.xlu0 %56
    %59 = vset.pattern.permute.xlu0 1
    %60 = vperm.xlu0 %59, %v22
    %v61 = vpop.permute.xlu0 %60
    %63 = vset.pattern.permute.xlu0 1
    %64 = vperm.xlu0 %63, %v23
    %v65 = vpop.permute.xlu0 %64
    %v67 = vadd.f32 %v47, %v53
    %v68 = vadd.f32 %v48, %v57
    %v69 = vadd.f32 %v49, %v61
    %v70 = vadd.f32 %v50, %v65
    %v71 = vtanh.pop %v67
    %v72 = vtanh.pop %v68
    %v73 = vtanh.pop %v69
    %v74 = vtanh.pop %v70
    %v75 = vmul.f32 %v71, %v71
    %v76 = vmul.f32 %v72, %v72
    %v77 = vmul.f32 %v73, %v73
    %v78 = vmul.f32 %v74, %v74
    %v79 = vsub.f32 1.0, %v75
    %v80 = vsub.f32 1.0, %v76
    %v81 = vsub.f32 1.0, %v77
    %v82 = vsub.f32 1.0, %v78
    %v83 = vmul.f32 %v79, %v27
    %v84 = vmul.f32 %v80, %v32
    %v85 = vmul.f32 %v81, %v37
    %v86 = vmul.f32 %v82, %v42
    %87 = vst [vmem:[#allocation2] sm:$0xff] %v71
    %88 = vst [vmem:[#allocation2 + $0x10] sm:$0xff] %v72
    %89 = vst [vmem:[#allocation2 + $0x20] sm:$0xff] %v73
    %90 = vst [vmem:[#allocation2 + $0x30] sm:$0xff] %v74
    %91 = vst [vmem:[#allocation2 + $0x8] sm:$0xff] %v83
    %92 = vst [vmem:[#allocation2 + $0x18] sm:$0xff] %v84
    %93 = vst [vmem:[#allocation2 + $0x28] sm:$0xff] %v85
    %94 = vst [vmem:[#allocation2 + $0x38] sm:$0xff] %v86
    %v95 = vld [vmem:[%s3] sm:$0xff]
    %v96 = vld [vmem:[%s3 + $0x8] sm:$0xff]
    %v97 = vld [vmem:[%s3 + $0x10] sm:$0xff]
    %v98 = vld [vmem:[%s3 + $0x18] sm:$0xff]
    %v99 = vld [vmem:[#allocation2] sm:$0xff]
    %v100 = vld [vmem:[#allocation2 + $0x8] sm:$0xff]
    %v101 = vld [vmem:[#allocation2 + $0x10] sm:$0xff]
    %v102 = vld [vmem:[#allocation2 + $0x18] sm:$0xff]
    %v103 = vld [vmem:[#allocation2 + $0x20] sm:$0xff]
    %v104 = vld [vmem:[#allocation2 + $0x28] sm:$0xff]
    %v105 = vld [vmem:[#allocation2 + $0x30] sm:$0xff]
    %v106 = vld [vmem:[#allocation2 + $0x38] sm:$0xff]
    %vm107 = vcmask 261120
    %v109 = vsel %vm107, %v95, 0
    %v112 = vsel %vm107, %v96, 0
    %v115 = vsel %vm107, %v97, 0
    %v118 = vsel %vm107, %v98, 0
    %120 = vmatpush.msra.mxu0 0.0
    %121 = vmatpush.msra.mxu0 0.0
    %122 = vmatpush.msra.mxu0 0.0
    %123 = vmatpush.msra.mxu0 0.0
    %124 = vmatpush.msra.mxu0 0.0
    %125 = vmatpush.msra.mxu0 0.0
    %126 = vmatpush.msra.mxu0 0.0
    %127 = vmatpush.msra.mxu0 0.0
    %128 = vmatpush.msra.mxu0 0.0
    %129 = vmatpush.msra.mxu0 0.0
    %130 = vmatpush.msra.mxu0 0.0
    %131 = vmatpush.msra.mxu0 0.0
    %132 = vmatpush.msra.mxu0 %v105
    %133 = vmatpush.msra.mxu0 %v103
    %134 = vmatpush.msra.mxu0 %v101
    %135 = vmatpush.msra.mxu0 %v99
    %136 = vmatmul.f32.gmra.mxu0 %v109
    %v137 = vpop.f32.mrf.mxu0
    %v138 = vadd.f32 0.0, %v137
    %139 = vmatmul.f32.gmra.mxu0 %v112
    %v140 = vpop.f32.mrf.mxu0
    %v141 = vadd.f32 0.0, %v140
    %142 = vmatmul.f32.gmra.mxu0 %v115
    %v143 = vpop.f32.mrf.mxu0
    %v144 = vadd.f32 0.0, %v143
    %145 = vmatmul.f32.gmra.mxu0 %v118
    %v146 = vpop.f32.mrf.mxu0
    %v147 = vadd.f32 0.0, %v146
    %148 = vdwg.mxu0
    %149 = vmatpush.msra.mxu0 0.0
    %150 = vmatpush.msra.mxu0 0.0
    %151 = vmatpush.msra.mxu0 0.0
    %152 = vmatpush.msra.mxu0 0.0
    %153 = vmatpush.msra.mxu0 0.0
    %154 = vmatpush.msra.mxu0 0.0
    %155 = vmatpush.msra.mxu0 0.0
    %156 = vmatpush.msra.mxu0 0.0
    %157 = vmatpush.msra.mxu0 0.0
    %158 = vmatpush.msra.mxu0 0.0
    %159 = vmatpush.msra.mxu0 0.0
    %160 = vmatpush.msra.mxu0 0.0
    %161 = vmatpush.msra.mxu0 %v106
    %162 = vmatpush.msra.mxu0 %v104
    %163 = vmatpush.msra.mxu0 %v102
    %164 = vmatpush.msra.mxu0 %v100
    %165 = vmatmul.f32.gmra.mxu0 %v109
    %v166 = vpop.f32.mrf.mxu0
    %v167 = vadd.f32 0.0, %v166
    %168 = vmatmul.f32.gmra.mxu0 %v112
    %v169 = vpop.f32.mrf.mxu0
    %v170 = vadd.f32 0.0, %v169
    %171 = vmatmul.f32.gmra.mxu0 %v115
    %v172 = vpop.f32.mrf.mxu0
    %v173 = vadd.f32 0.0, %v172
    %174 = vmatmul.f32.gmra.mxu0 %v118
    %v175 = vpop.f32.mrf.mxu0
    %v176 = vadd.f32 0.0, %v175
    %177 = vdwg.mxu0
    %178 = vset.pattern.permute.xlu0 2
    %179 = vperm.xlu0 %178, %v20
    %v180 = vpop.permute.xlu0 %179
    %182 = vset.pattern.permute.xlu0 2
    %183 = vperm.xlu0 %182, %v21
    %v184 = vpop.permute.xlu0 %183
    %186 = vset.pattern.permute.xlu0 2
    %187 = vperm.xlu0 %186, %v22
    %v188 = vpop.permute.xlu0 %187
    %190 = vset.pattern.permute.xlu0 2
    %191 = vperm.xlu0 %190, %v23
    %v192 = vpop.permute.xlu0 %191
    %v194 = vadd.f32 %v138, %v180
    %v195 = vadd.f32 %v141, %v184
    %v196 = vadd.f32 %v144, %v188
    %v197 = vadd.f32 %v147, %v192
    %v198 = vtanh.pop %v194
    %v199 = vtanh.pop %v195
    %v200 = vtanh.pop %v196
    %v201 = vtanh.pop %v197
    %v202 = vmul.f32 %v198, %v198
    %v203 = vmul.f32 %v199, %v199
    %v204 = vmul.f32 %v200, %v200
    %v205 = vmul.f32 %v201, %v201
    %v206 = vsub.f32 1.0, %v202
    %v207 = vsub.f32 1.0, %v203
    %v208 = vsub.f32 1.0, %v204
    %v209 = vsub.f32 1.0, %v205
    %v210 = vmul.f32 %v206, %v167
    %v211 = vmul.f32 %v207, %v170
    %v212 = vmul.f32 %v208, %v173
    %v213 = vmul.f32 %v209, %v176
    %214 = vset.pattern.permute.xlu0 3
    %215 = vperm.xlu0 %214, %v20
    %v216 = vpop.permute.xlu0 %215
    %218 = vset.pattern.permute.xlu0 3
    %219 = vperm.xlu0 %218, %v21
    %v220 = vpop.permute.xlu0 %219
    %222 = vset.pattern.permute.xlu0 3
    %223 = vperm.xlu0 %222, %v22
    %v224 = vpop.permute.xlu0 %223
    %226 = vset.pattern.permute.xlu0 3
    %227 = vperm.xlu0 %226, %v23
    %v228 = vpop.permute.xlu0 %227
    %v230 = vmul.f32 %v198, %v216
    %v231 = vmul.f32 %v199, %v220
    %v232 = vmul.f32 %v200, %v224
    %v233 = vmul.f32 %v201, %v228
    %v234 = vadd.f32 %v230, %v231
    %v235 = vadd.f32 %v234, %v232
    %v236 = vadd.f32 %v235, %v233
    %v237 = vrot.slane %v236, 4
    %v238 = vadd.f32 %v236, %v237
    %v239 = vrot.slane %v238, 2
    %v240 = vadd.f32 %v238, %v239
    %v241 = vrot.slane %v240, 1
    %v242 = vadd.f32 %v240, %v241
    %243 = vset.pattern.permute.xlu0 4
    %244 = vperm.xlu0 %243, %v20
    %v245 = vpop.permute.xlu0 %244
    %v247 = vadd.f32 %v242, %v245
    %v248 = vmul.f32 %v210, %v216
    %v249 = vmul.f32 %v211, %v220
    %v250 = vmul.f32 %v212, %v224
    %v251 = vmul.f32 %v213, %v228
    %v252 = vadd.f32 %v248, %v249
    %v253 = vadd.f32 %v252, %v250
    %v254 = vadd.f32 %v253, %v251
    %v255 = vrot.slane %v254, 4
    %v256 = vadd.f32 %v254, %v255
    %v257 = vrot.slane %v256, 2
    %v258 = vadd.f32 %v256, %v257
    %v259 = vrot.slane %v258, 1
    %v260 = vadd.f32 %v258, %v259
    %s261 = sld [smem:[#allocation3]]
    %v262 = vmul.f32 %v19, 1.5707964
    %v263 = vand.u32 2147483647, %v262
    %vm264 = vcmp.le.f32.partialorder %v263, 0.7853982
    %vm265 = vcmp.lt.s32.totalorder %v262, 0
    %v266 = vand.u32 %v262, 2139095040
    %v267 = vshrl.u32 %v266, 23
    %v268 = vsub.s32 %v267, 127
    %v269 = vand.u32 2147483647, %v262
    %v270 = vand.u32 %v269, 8388607
    %v271 = vor.u32 %v270, 8388608
    %v272 = vsub.s32 0, %v271
    %v273 = vadd.s32 %v268, 1
    %vm274 = vcmp.gt.s32.totalorder %v273, 0
    %v275 = vsel %vm274, %v273, 0
    %v276 = vshrl.u32 %v275, 5
    %v277 = vand.u32 %v275, 31
    %v278 = vsub.s32 32, %v277
    %v279 = vshrl.u32 683565275, %v278
    %v280 = vshll.u32 683565275, %v277
    %v281 = vshrl.u32 2475754826, %v278
    %v282 = vor.u32 %v280, %v281
    %v283 = vshll.u32 2475754826, %v277
    %v284 = vshrl.u32 2131351028, %v278
    %v285 = vor.u32 %v283, %v284
    %v286 = vshll.u32 2131351028, %v277
    %v287 = vshrl.u32 2102212464, %v278
    %v288 = vor.u32 %v286, %v287
    %v289 = vshll.u32 2102212464, %v277
    %v290 = vshrl.u32 920167782, %v278
    %v291 = vor.u32 %v289, %v290
    %v292 = vshll.u32 920167782, %v277
    %v293 = vshrl.u32 1326507024, %v278
    %v294 = vor.u32 %v292, %v293
    %vm295 = vcmp.lt.s32.totalorder %v276, 1
    %vm296 = vcmp.lt.s32.totalorder %v276, 2
    %vm297 = vcmp.lt.s32.totalorder %v276, 3
    %vm298 = vcmp.lt.s32.totalorder %v276, 4
    %v299 = vsel %vm295, %v279, %v282
    %v300 = vsel %vm298, %v288, 2102212464
    %v301 = vsel %vm297, %v285, %v300
    %v302 = vsel %vm296, %v299, %v301
    %v303 = vsel %vm295, %v282, %v285
    %v304 = vsel %vm298, %v291, 920167782
    %v305 = vsel %vm297, %v288, %v304
    %v306 = vsel %vm296, %v303, %v305
    %v307 = vsel %vm295, %v285, %v288
    %v308 = vsel %vm298, %v294, 1326507024
    %v309 = vsel %vm297, %v291, %v308
    %v310 = vsel %vm296, %v307, %v309
    %v311 = vshll.u32 %v271, 8
    %v312 = vand.u32 %v311, 65535
    %v313 = vshrl.u32 %v311, 16
    %v314 = vand.u32 %v310, 65535
    %v315 = vshrl.u32 %v310, 16
    %v316 = vmul.u32 %v312, %v314
    %v317 = vmul.u32 %v312, %v315
    %v318 = vmul.u32 %v313, %v314
    %v319 = vmul.u32 %v313, %v315
    %v320 = vshll.u32 %v317, 16
    %v321 = vshrl.u32 %v317, 16
    %v322 = vshll.u32 %v318, 16
    %v323 = vshrl.u32 %v318, 16
    %vm324 = vc.u32 %v316, %v320
    %v325 = vsel %vm324, 1, 0
    %v326 = vadd.s32 %v316, %v320
    %v327 = vadd.s32 %v319, %v325
    %vm328 = vc.u32 %v326, %v322
    %v329 = vsel %vm328, 1, 0
    %v330 = vadd.s32 %v326, %v322
    %v331 = vadd.s32 %v327, %v329
    %v332 = vadd.s32 %v331, %v321
    %v333 = vadd.s32 %v332, %v323
    %v334 = vand.u32 %v311, 65535
    %v335 = vshrl.u32 %v311, 16
    %v336 = vand.u32 %v306, 65535
    %v337 = vshrl.u32 %v306, 16
    %v338 = vmul.u32 %v334, %v336
    %v339 = vmul.u32 %v334, %v337
    %v340 = vmul.u32 %v335, %v336
    %v341 = vmul.u32 %v335, %v337
    %v342 = vshll.u32 %v339, 16
    %v343 = vshrl.u32 %v339, 16
    %v344 = vshll.u32 %v340, 16
    %v345 = vshrl.u32 %v340, 16
    %vm346 = vc.u32 %v338, %v342
    %v347 = vsel %vm346, 1, 0
    %v348 = vadd.s32 %v338, %v342
    %v349 = vadd.s32 %v341, %v347
    %vm350 = vc.u32 %v348, %v344
    %v351 = vsel %vm350, 1, 0
    %v352 = vadd.s32 %v348, %v344
    %v353 = vadd.s32 %v349, %v351
    %v354 = vadd.s32 %v353, %v343
    %v355 = vadd.s32 %v354, %v345
    %v356 = vmul.u32 %v311, %v302
    %v357 = vadd.s32 %v333, %v352
    %vm358 = vc.u32 %v333, %v352
    %v359 = vadd.s32 %v355, 1
    %v360 = vsel %vm358, %v359, %v355
    %v361 = vadd.s32 %v356, %v360
    %v362 = vadd.s32 %v361, 536870912
    %v363 = vshrl.u32 %v362, 30
    %v364 = vshll.u32 %v363, 30
    %v365 = vsub.s32 %v361, %v364
    %vm366 = vcmp.lt.s32.totalorder %v365, 0
    %v367 = vsub.s32 0, %v365
    %v368 = vsel %vm366, %v367, %v365
    %v369 = vclz %v368
    %v370 = vsub.s32 %v369, 2
    %vm371 = vcmp.gt.s32.totalorder 0, %v370
    %v372 = vsel %vm371, 0, %v370
    %v373 = vsub.s32 32, %v372
    %v374 = vshll.u32 %v365, %v372
    %v375 = vshrl.u32 %v357, %v373
    %v376 = vor.u32 %v374, %v375
    %v377 = vsub.s32 4294967266, %v372
    %v378 = vadd.s32 %v377, 127
    %v379 = vshll.u32 %v378, 23
    %v380 = vor.u32 4788187, %v379
    %v381 = vand.u32 2147483647, %v380
    %v383 = vcvt.s32.f32 %v376
    %v384 = vmul.f32 %v383, %v381
    %v385 = vxor.u32 %v384, 2147483648
    %v386 = vsel %vm265, %v385, %v384
    %v387 = vsub.s32 4, %v363
    %v388 = vsel %vm265, %v387, %v363
    %v389 = vsel %vm264, %v262, %v386
    %v390 = vsel %vm264, 0, %v388
    %v391 = vmul.f32 %v389, %v389
    %v392 = vmul.f32 %v391, -0.001358992
    %v393 = vadd.f32 %v392, 0.041655596
    %v394 = vmul.f32 %v391, %v393
    %v395 = vadd.f32 %v394, -0.4999988
    %v396 = vmul.f32 %v391, %v395
    %v397 = vadd.f32 1.0, %v396
    %v398 = vmul.f32 %v389, %v389
    %v399 = vmul.f32 %v398, -0.00019511016
    %v400 = vadd.f32 %v399, 0.008332121
    %v401 = vmul.f32 %v398, %v400
    %v402 = vadd.f32 %v401, -0.16666654
    %v403 = vmul.f32 %v398, %v402
    %v404 = vadd.f32 %v403, 1.0
    %v405 = vmul.f32 %v404, %v389
    %vm406 = vweird.f32 %v262
    %v407 = vadd.s32 %v390, 3
    %v408 = vand.u32 %v407, 3
    %vm409 = vcmp.lt.s32.totalorder %v408, 2
    %vm410 = vcmp.eq.s32.totalorder %v408, 0
    %v411 = vxor.u32 %v405, 2147483648
    %v412 = vsel %vm410, %v397, %v411
    %vm413 = vcmp.eq.s32.totalorder %v408, 2
    %v414 = vxor.u32 %v397, 2147483648
    %v415 = vsel %vm413, %v414, %v405
    %v416 = vsel %vm409, %v412, %v415
    %v417 = vsel %vm406, nan, %v416
    %v418 = vadd.f32 %v19, %v417
    %v419 = vmul.f32 %v418, 2.5
    %v420 = vand.u32 2147483647, %v262
    %vm421 = vcmp.le.f32.partialorder %v420, 0.7853982
    %vm422 = vcmp.lt.s32.totalorder %v262, 0
    %v423 = vand.u32 %v262, 2139095040
    %v424 = vshrl.u32 %v423, 23
    %v425 = vsub.s32 %v424, 127
    %v426 = vand.u32 2147483647, %v262
    %v427 = vand.u32 %v426, 8388607
    %v428 = vor.u32 %v427, 8388608
    %v429 = vsub.s32 0, %v428
    %v430 = vadd.s32 %v425, 1
    %vm431 = vcmp.gt.s32.totalorder %v430, 0
    %v432 = vsel %vm431, %v430, 0
    %v433 = vshrl.u32 %v432, 5
    %v434 = vand.u32 %v432, 31
    %v435 = vsub.s32 32, %v434
    %v436 = vshrl.u32 683565275, %v435
    %v437 = vshll.u32 683565275, %v434
    %v438 = vshrl.u32 2475754826, %v435
    %v439 = vor.u32 %v437, %v438
    %v440 = vshll.u32 2475754826, %v434
    %v441 = vshrl.u32 2131351028, %v435
    %v442 = vor.u32 %v440, %v441
    %v443 = vshll.u32 2131351028, %v434
    %v444 = vshrl.u32 2102212464, %v435
    %v445 = vor.u32 %v443, %v444
    %v446 = vshll.u32 2102212464, %v434
    %v447 = vshrl.u32 920167782, %v435
    %v448 = vor.u32 %v446, %v447
    %v449 = vshll.u32 920167782, %v434
    %v450 = vshrl.u32 1326507024, %v435
    %v451 = vor.u32 %v449, %v450
    %vm452 = vcmp.lt.s32.totalorder %v433, 1
    %vm453 = vcmp.lt.s32.totalorder %v433, 2
    %vm454 = vcmp.lt.s32.totalorder %v433, 3
    %vm455 = vcmp.lt.s32.totalorder %v433, 4
    %v456 = vsel %vm452, %v436, %v439
    %v457 = vsel %vm455, %v445, 2102212464
    %v458 = vsel %vm454, %v442, %v457
    %v459 = vsel %vm453, %v456, %v458
    %v460 = vsel %vm452, %v439, %v442
    %v461 = vsel %vm455, %v448, 920167782
    %v462 = vsel %vm454, %v445, %v461
    %v463 = vsel %vm453, %v460, %v462
    %v464 = vsel %vm452, %v442, %v445
    %v465 = vsel %vm455, %v451, 1326507024
    %v466 = vsel %vm454, %v448, %v465
    %v467 = vsel %vm453, %v464, %v466
    %v468 = vshll.u32 %v428, 8
    %v469 = vand.u32 %v468, 65535
    %v470 = vshrl.u32 %v468, 16
    %v471 = vand.u32 %v467, 65535
    %v472 = vshrl.u32 %v467, 16
    %v473 = vmul.u32 %v469, %v471
    %v474 = vmul.u32 %v469, %v472
    %v475 = vmul.u32 %v470, %v471
    %v476 = vmul.u32 %v470, %v472
    %v477 = vshll.u32 %v474, 16
    %v478 = vshrl.u32 %v474, 16
    %v479 = vshll.u32 %v475, 16
    %v480 = vshrl.u32 %v475, 16
    %vm481 = vc.u32 %v473, %v477
    %v482 = vsel %vm481, 1, 0
    %v483 = vadd.s32 %v473, %v477
    %v484 = vadd.s32 %v476, %v482
    %vm485 = vc.u32 %v483, %v479
    %v486 = vsel %vm485, 1, 0
    %v487 = vadd.s32 %v483, %v479
    %v488 = vadd.s32 %v484, %v486
    %v489 = vadd.s32 %v488, %v478
    %v490 = vadd.s32 %v489, %v480
    %v491 = vand.u32 %v468, 65535
    %v492 = vshrl.u32 %v468, 16
    %v493 = vand.u32 %v463, 65535
    %v494 = vshrl.u32 %v463, 16
    %v495 = vmul.u32 %v491, %v493
    %v496 = vmul.u32 %v491, %v494
    %v497 = vmul.u32 %v492, %v493
    %v498 = vmul.u32 %v492, %v494
    %v499 = vshll.u32 %v496, 16
    %v500 = vshrl.u32 %v496, 16
    %v501 = vshll.u32 %v497, 16
    %v502 = vshrl.u32 %v497, 16
    %vm503 = vc.u32 %v495, %v499
    %v504 = vsel %vm503, 1, 0
    %v505 = vadd.s32 %v495, %v499
    %v506 = vadd.s32 %v498, %v504
    %vm507 = vc.u32 %v505, %v501
    %v508 = vsel %vm507, 1, 0
    %v509 = vadd.s32 %v505, %v501
    %v510 = vadd.s32 %v506, %v508
    %v511 = vadd.s32 %v510, %v500
    %v512 = vadd.s32 %v511, %v502
    %v513 = vmul.u32 %v468, %v459
    %v514 = vadd.s32 %v490, %v509
    %vm515 = vc.u32 %v490, %v509
    %v516 = vadd.s32 %v512, 1
    %v517 = vsel %vm515, %v516, %v512
    %v518 = vadd.s32 %v513, %v517
    %v519 = vadd.s32 %v518, 536870912
    %v520 = vshrl.u32 %v519, 30
    %v521 = vshll.u32 %v520, 30
    %v522 = vsub.s32 %v518, %v521
    %vm523 = vcmp.lt.s32.totalorder %v522, 0
    %v524 = vsub.s32 0, %v522
    %v525 = vsel %vm523, %v524, %v522
    %v526 = vclz %v525
    %v527 = vsub.s32 %v526, 2
    %vm528 = vcmp.gt.s32.totalorder 0, %v527
    %v529 = vsel %vm528, 0, %v527
    %v530 = vsub.s32 32, %v529
    %v531 = vshll.u32 %v522, %v529
    %v532 = vshrl.u32 %v514, %v530
    %v533 = vor.u32 %v531, %v532
    %v534 = vsub.s32 4294967266, %v529
    %v535 = vadd.s32 %v534, 127
    %v536 = vshll.u32 %v535, 23
    %v537 = vor.u32 4788187, %v536
    %v538 = vand.u32 2147483647, %v537
    %v540 = vcvt.s32.f32 %v533
    %v541 = vmul.f32 %v540, %v538
    %v542 = vxor.u32 %v541, 2147483648
    %v543 = vsel %vm422, %v542, %v541
    %v544 = vsub.s32 4, %v520
    %v545 = vsel %vm422, %v544, %v520
    %v546 = vsel %vm421, %v262, %v543
    %v547 = vsel %vm421, 0, %v545
    %v548 = vmul.f32 %v546, %v546
    %v549 = vmul.f32 %v548, -0.001358992
    %v550 = vadd.f32 %v549, 0.041655596
    %v551 = vmul.f32 %v548, %v550
    %v552 = vadd.f32 %v551, -0.4999988
    %v553 = vmul.f32 %v548, %v552
    %v554 = vadd.f32 1.0, %v553
    %v555 = vmul.f32 %v546, %v546
    %v556 = vmul.f32 %v555, -0.00019511016
    %v557 = vadd.f32 %v556, 0.008332121
    %v558 = vmul.f32 %v555, %v557
    %v559 = vadd.f32 %v558, -0.16666654
    %v560 = vmul.f32 %v555, %v559
    %v561 = vadd.f32 %v560, 1.0
    %v562 = vmul.f32 %v561, %v546
    %vm563 = vweird.f32 %v262
    %v564 = vand.u32 %v547, 3
    %vm565 = vcmp.lt.s32.totalorder %v564, 2
    %vm566 = vcmp.eq.s32.totalorder %v564, 0
    %v567 = vxor.u32 %v562, 2147483648
    %v568 = vsel %vm566, %v554, %v567
    %vm569 = vcmp.eq.s32.totalorder %v564, 2
    %v570 = vxor.u32 %v554, 2147483648
    %v571 = vsel %vm569, %v570, %v562
    %v572 = vsel %vm565, %v568, %v571
    %v573 = vsel %vm563, nan, %v572
    %v574 = vmul.f32 %v573, 1.5707964
    %v575 = vadd.f32 %v574, 1.0
    %v576 = vstv %s261
    %v577 = vmul.f32 %v576, %v575
    %v578 = vsub.f32 %v260, %v577
    %v579 = vsub.f32 %v247, %v419
    %v580 = vlaneseq
    %v581 = vand.u32 %v580, 127
    %vm582 = vcmp.lt.s32.totalorder %v581, 64
    %v583 = vmul.f32 %v578, %v578
    %v584 = vsel %vm582, %v583, 0.0
    %vm585 = vcmp.lt.s32.totalorder %v581, 72
    %v586 = vmul.f32 %v579, %v579
    %v587 = vsel %vm585, %v586, 0.0
    %v588 = vadd.f32 %v584, %v587
    %vm589 = vcmask 1040384
    %v590 = vsel %vm589, %v588, 0.0
    %591 = vadd.xlane.f32.xlu0 %v590
    %v592 = vpop.xlane.xlu0 %591
    %v593 = vrot.slane %v592, 4
    %v594 = vadd.f32 %v592, %v593
    %v595 = vrot.slane %v594, 2
    %v596 = vadd.f32 %v594, %v595
    %v597 = vrot.slane %v596, 1
    %v598 = vadd.f32 %v596, %v597
    %s599 = vtos %v598
    %s600 = scalar_lea.smem [#allocation4], 0
    %601 = sst [smem:[%s600]] %s599
    // Predicated region
    $region18: #{pinn_loss.1} parent=1 // pred_check
      _
    $region19: #{pinn_loss.1} parent=1 // pred_check_branch
      %603 = sbr.rel (0) target = $region21
    $region20: #{pinn_loss.1} parent=1 // pred_region
      %605 = vsyncadd [#allocation5], 0
      %s607 = sshll.u32 %s4, 4
      %s608 = int_to_ptr.hbm [resolvable:$true] %s607
      %610 = dma.smem_to_hbm [#allocation4], 16, %s608, [#allocation5]
    $region21: #{pinn_loss.1} parent=1 // pred_fallthru
      _
    // Predicated region
    $region22: #{pinn_loss.1} parent=1 // pred_check
      _
    $region23: #{pinn_loss.1} parent=1 // pred_check_branch
      %612 = sbr.rel (0) target = $region25
    $region24: #{pinn_loss.1} parent=1 // pred_region
      %614 = dma.done [#allocation5], 16
    $region25: #{pinn_loss.1} parent=1 // pred_fallthru
      _
    %615 = sfence
    %616 = vsyncpa [#allocation5], 1

</llo_original>
